<compile_context>
chip_gen: v7x
topology: tpu7x:2x2x1
jax: 0.10.0
libtpu: 0.0.40
codegen_flags: <defaults>
</compile_context>

<pallas_src>
import functools

import jax
import jax.numpy as jnp
from jax.experimental import pallas as pl
from jax.experimental.pallas import tpu as pltpu

BN_EPS = 1e-5


def _round_up(v, m):
    return (v + m - 1) // m * m


def _make_conv_stats_kernel(offsets, l2, wp_eff, ow_valid):
    """Pass-1 kernel: per-image conv GEMM + per-channel sum / sum-of-squares.

    offsets : static flat lane offsets of the KH*KW shifted windows (just (0,)
              for the pre-im2col'd stride>1 fallback).
    l2      : width of the per-image output slab (= OH * wp_eff lanes).
    wp_eff  : row pitch of the slab; columns with (col % wp_eff) >= ow_valid
              are wrap-around garbage and are excluded from the batch stats
              (and sliced away in the XLA epilogue).
    """

    def kernel(w_ref, x_ref, y_ref, sum_ref, sq_ref):
        cout_pad = w_ref.shape[1]
        acc = jnp.zeros((cout_pad, l2), jnp.float32)
        # KH*KW shifted contiguous windows of the flattened padded image; each
        # contributes a [Cout_pad, Cin_pad] x [Cin_pad, l2] MXU matmul.
        for idx, d in enumerate(offsets):
            win = x_ref[0, :, pl.ds(d, l2)]          # [cin_pad, l2] bf16
            acc = acc + jnp.dot(w_ref[idx], win,
                                preferred_element_type=jnp.float32)
        y_ref[0] = acc.astype(y_ref.dtype)           # bf16 intermediate (review #3)

        # Per-channel batch statistics over the *valid* output columns only.
        col = jax.lax.broadcasted_iota(jnp.int32, (1, l2), 1)
        valid = (col % wp_eff) < ow_valid
        acc_m = jnp.where(valid, acc, 0.0)
        sum_ref[0] = jnp.sum(acc_m, axis=1, keepdims=True)
        # TODO(synk): E[y^2]-E[y]^2 in f32 can cancel when |mean| >> std; a
        # shifted sum-of-squares (or a second stats pass) is more robust at scale.
        sq_ref[0] = jnp.sum(acc_m * acc_m, axis=1, keepdims=True)

    return kernel


@functools.partial(jax.jit, static_argnames=("stride", "padding"))
def conv_bn_relu(x, weight, gamma, beta, *, stride=1, padding=0):
    """x: NCHW f32, weight: [Cout, Cin, KH, KW] f32, gamma/beta: [Cout] f32."""
    n, cin, h, w = x.shape
    cout, _, kh, kw = weight.shape
    hp, wp = h + 2 * padding, w + 2 * padding
    oh = (hp - kh) // stride + 1
    ow = (wp - kw) // stride + 1

    cout_pad = _round_up(cout, 16)                    # bf16 sublane packing

    xp = x.astype(jnp.bfloat16)                       # bf16 *before* any layout op
    if padding > 0:
        xp = jnp.pad(xp, ((0, 0), (0, 0), (padding, padding), (padding, padding)))

    if stride == 1:
        # ---- fused im2col: shifted contiguous windows of the flat image ----
        kwin_pad = _round_up(cin, 16)                 # per-window contraction dim
        offsets = tuple(i * wp + j for i in range(kh) for j in range(kw))
        wp_eff = wp
        l2 = oh * wp
        xwidth = max(hp * wp, max(offsets) + l2)      # zero tail so slices stay in-bounds
        x_in = jnp.pad(xp, ((0, 0), (0, kwin_pad - cin), (0, 0), (0, 0)))
        x_in = x_in.reshape(n, kwin_pad, hp * wp)
        x_in = jnp.pad(x_in, ((0, 0), (0, 0), (0, xwidth - hp * wp)))
        # Weights as [KH*KW, Cout_pad, Cin_pad]; window idx = i*KW + j.
        w_in = weight.transpose(2, 3, 0, 1).reshape(kh * kw, cout, cin)
        w_in = jnp.pad(w_in, ((0, 0), (0, cout_pad - cout), (0, kwin_pad - cin)))
        w_in = w_in.astype(jnp.bfloat16)
    else:
        # ---- stride > 1 fallback: bf16 XLA im2col feeding the same kernel
        # in its degenerate single-window configuration. ----
        # TODO(synk): extend the fused path to stride > 1 (lane-strided window
        # reads) so the patch matrix disappears there as well.
        k_dim = cin * kh * kw
        kwin_pad = _round_up(k_dim, 16)
        offsets = (0,)
        wp_eff = ow
        l2 = oh * ow
        xwidth = l2
        cols = []
        for i in range(kh):
            for j in range(kw):
                cols.append(xp[:, :, i:i + stride * oh:stride,
                               j:j + stride * ow:stride])
        x_in = jnp.stack(cols, axis=2).reshape(n, k_dim, l2)
        x_in = jnp.pad(x_in, ((0, 0), (0, kwin_pad - k_dim), (0, 0)))
        w_in = weight.reshape(cout, k_dim)
        w_in = jnp.pad(w_in, ((0, cout_pad - cout), (0, kwin_pad - k_dim)))
        w_in = w_in.astype(jnp.bfloat16)[None]

    nwin = len(offsets)

    # Explicit VMEM budget (v5e 16 MiB / v6e 32 MiB / v7x 32 MiB scoped defaults).
    blk_bytes = (2 * kwin_pad * xwidth * 2            # x image, double-buffered, bf16
                 + 2 * cout_pad * l2 * 2              # y slab, double-buffered, bf16
                 + 2 * nwin * cout_pad * kwin_pad * 2 # weights (constant index_map)
                 + cout_pad * l2 * 4)                 # live f32 accumulator
    vmem_limit = int(min(64 * 2 ** 20, max(32 * 2 ** 20, 2 * blk_bytes)))
    # TODO(synk): for large images, also tile the flattened h*w axis in
    # output-row blocks so the per-step working set fits v7x's 64 MiB VMEM.

    kernel = _make_conv_stats_kernel(offsets, l2, wp_eff, ow)

    y_pad, sum_p, sq_p = pl.pallas_call(
        kernel,
        out_shape=(
            jax.ShapeDtypeStruct((n, cout_pad, l2), jnp.bfloat16),
            jax.ShapeDtypeStruct((n, cout_pad, 1), jnp.float32),
            jax.ShapeDtypeStruct((n, cout_pad, 1), jnp.float32),
        ),
        grid=(n,),
        in_specs=[
            # Weights resident (constant index_map; pl.Buffered(1) could shave
            # one VMEM copy on v7x — left out to keep compile risk minimal).
            pl.BlockSpec((nwin, cout_pad, kwin_pad), lambda b: (0, 0, 0)),
            pl.BlockSpec((1, kwin_pad, xwidth), lambda b: (b, 0, 0)),
        ],
        out_specs=(
            pl.BlockSpec((1, cout_pad, l2), lambda b: (b, 0, 0)),
            pl.BlockSpec((1, cout_pad, 1), lambda b: (b, 0, 0)),
            pl.BlockSpec((1, cout_pad, 1), lambda b: (b, 0, 0)),
        ),
        compiler_params=pltpu.CompilerParams(
            dimension_semantics=("parallel",),        # per-image -> megacore shardable
            vmem_limit_bytes=vmem_limit,
        ),
    )(w_in, x_in)

    # ---- glue: reduce per-image partial stats, fold into one scale & shift ----
    m_valid = n * oh * ow
    ch_sum = jnp.sum(sum_p, axis=0)[:cout, 0]
    ch_sq = jnp.sum(sq_p, axis=0)[:cout, 0]
    mean = ch_sum / m_valid
    var = jnp.maximum(ch_sq / m_valid - mean * mean, 0.0)   # biased (training BN)
    scale = gamma * jax.lax.rsqrt(var + BN_EPS)
    shift = beta - mean * scale

    # ---- epilogue in XLA, fused with the unpadding slice/reshape (review #2a):
    # one read of y_pad + one write of the final NCHW output, no transpose. ----
    y = y_pad[:, :cout, :].reshape(n, cout, oh, wp_eff)[:, :, :, :ow]
    y = y.astype(jnp.float32)
    out = jnp.maximum(y * scale[None, :, None, None] + shift[None, :, None, None], 0.0)
    return out


def _reference(x, weight, gamma, beta, *, stride=1, padding=0):
    """Pure-JAX reference mirroring PyTorch Conv2d+BN(train)+ReLU."""
    y = jax.lax.conv_general_dilated(
        x, weight, window_strides=(stride, stride),
        padding=[(padding, padding), (padding, padding)],
        dimension_numbers=("NCHW", "OIHW", "NCHW"))
    mean = jnp.mean(y, axis=(0, 2, 3), keepdims=True)
    var = jnp.mean((y - mean) ** 2, axis=(0, 2, 3), keepdims=True)
    yhat = (y - mean) * jax.lax.rsqrt(var + BN_EPS)
    yhat = yhat * gamma.reshape(1, -1, 1, 1) + beta.reshape(1, -1, 1, 1)
    return jnp.maximum(yhat, 0.0)


if __name__ == "__main__":
    key = jax.random.PRNGKey(0)
    k_x, k_w, k_g, k_b = jax.random.split(key, 4)

    # Module config: _ConvBNReLU(in_channels=4, out_channels=8) -> k=3, stride=1, padding=0
    N, CIN, H, W = 2, 4, 16, 16
    COUT, KH, KW = 8, 3, 3
    STRIDE, PADDING = 1, 0

    x = jax.random.normal(k_x, (N, CIN, H, W), dtype=jnp.float32)
    weight = jax.random.normal(k_w, (COUT, CIN, KH, KW), dtype=jnp.float32) * 0.1
    gamma = 1.0 + 0.1 * jax.random.normal(k_g, (COUT,), dtype=jnp.float32)
    beta = 0.1 * jax.random.normal(k_b, (COUT,), dtype=jnp.float32)

    out = conv_bn_relu(x, weight, gamma, beta, stride=STRIDE, padding=PADDING)
    out = jax.block_until_ready(out)

    ref = _reference(x, weight, gamma, beta, stride=STRIDE, padding=PADDING)
    assert out.shape == ref.shape == (N, COUT, H - KH + 1, W - KW + 1)
    # bf16 MXU inputs + bf16 y intermediate leave a few bf16 ulp after the
    # (mean, 1/std) normalization; 5e-2 still catches any structural bug.
    err = float(jnp.max(jnp.abs(out - ref)))
    assert err < 5e-2, f"max abs error too large: {err}"

    print("KERNEL_OK")
</pallas_src>

<mosaic_0001>
module attributes {stable_mosaic.version = 11 : i64} {
  func.func @kernel(%arg0: i32, %arg1: memref<9x16x16xbf16, #tpu.memory_space<vmem>>, %arg2: memref<1x16x258xbf16, #tpu.memory_space<vmem>>, %arg3: memref<1x16x224xbf16, #tpu.memory_space<vmem>>, %arg4: memref<1x16x1xf32, #tpu.memory_space<vmem>>, %arg5: memref<1x16x1xf32, #tpu.memory_space<vmem>>) attributes {dimension_semantics = [#tpu.dimension_semantics<parallel>], iteration_bounds = array<i64: 2>, scalar_prefetch = 0 : i64, scratch_operands = 0 : i64, tpu.core_type = #tpu.core_type<tc>, window_params = [{pipeline_mode = #tpu.pipeline_mode<synchronous>, transform_indices = @transform_0, window_bounds = array<i64: 9, 16, 16>}, {transform_indices = @transform_1, window_bounds = array<i64: 1, 16, 258>}, {transform_indices = @transform_2, window_bounds = array<i64: 1, 16, 224>}, {transform_indices = @transform_3, window_bounds = array<i64: 1, 16, 1>}, {transform_indices = @transform_4, window_bounds = array<i64: 1, 16, 1>}]} {
    %cst = arith.constant 0.000000e+00 : f32
    %0 = vector.broadcast %cst : f32 to vector<16x224xf32>
    %c0 = arith.constant 0 : index
    %c0_0 = arith.constant 0 : index
    %c0_1 = arith.constant 0 : index
    %1 = vector.load %arg2[%c0, %c0_0, %c0_1] : memref<1x16x258xbf16, #tpu.memory_space<vmem>>, vector<1x16x224xbf16>
    %2 = vector.shape_cast %1 : vector<1x16x224xbf16> to vector<16x224xbf16>
    %c0_2 = arith.constant 0 : index
    %c0_3 = arith.constant 0 : index
    %c0_4 = arith.constant 0 : index
    %3 = vector.load %arg1[%c0_2, %c0_3, %c0_4] : memref<9x16x16xbf16, #tpu.memory_space<vmem>>, vector<1x16x16xbf16>
    %4 = vector.shape_cast %3 : vector<1x16x16xbf16> to vector<16x16xbf16>
    %cst_5 = arith.constant dense<0.000000e+00> : vector<16x224xf32>
    %5 = tpu.matmul %4, %2, %cst_5 {dimension_numbers = #tpu.dot_dimension_numbers<[1], [0], [0], [1], [0, 0, 1, 1], [], []>} : vector<16x16xbf16>, vector<16x224xbf16>, vector<16x224xf32> -> vector<16x224xf32>
    %6 = arith.addf %0, %5 : vector<16x224xf32>
    %c0_6 = arith.constant 0 : index
    %c0_7 = arith.constant 0 : index
    %c1 = arith.constant 1 : index
    %7 = vector.load %arg2[%c0_6, %c0_7, %c1] : memref<1x16x258xbf16, #tpu.memory_space<vmem>>, vector<1x16x224xbf16>
    %8 = vector.shape_cast %7 : vector<1x16x224xbf16> to vector<16x224xbf16>
    %c1_8 = arith.constant 1 : index
    %c0_9 = arith.constant 0 : index
    %c0_10 = arith.constant 0 : index
    %9 = vector.load %arg1[%c1_8, %c0_9, %c0_10] : memref<9x16x16xbf16, #tpu.memory_space<vmem>>, vector<1x16x16xbf16>
    %10 = vector.shape_cast %9 : vector<1x16x16xbf16> to vector<16x16xbf16>
    %cst_11 = arith.constant dense<0.000000e+00> : vector<16x224xf32>
    %11 = tpu.matmul %10, %8, %cst_11 {dimension_numbers = #tpu.dot_dimension_numbers<[1], [0], [0], [1], [0, 0, 1, 1], [], []>} : vector<16x16xbf16>, vector<16x224xbf16>, vector<16x224xf32> -> vector<16x224xf32>
    %12 = arith.addf %6, %11 : vector<16x224xf32>
    %c0_12 = arith.constant 0 : index
    %c0_13 = arith.constant 0 : index
    %c2 = arith.constant 2 : index
    %13 = vector.load %arg2[%c0_12, %c0_13, %c2] : memref<1x16x258xbf16, #tpu.memory_space<vmem>>, vector<1x16x224xbf16>
    %14 = vector.shape_cast %13 : vector<1x16x224xbf16> to vector<16x224xbf16>
    %c2_14 = arith.constant 2 : index
    %c0_15 = arith.constant 0 : index
    %c0_16 = arith.constant 0 : index
    %15 = vector.load %arg1[%c2_14, %c0_15, %c0_16] : memref<9x16x16xbf16, #tpu.memory_space<vmem>>, vector<1x16x16xbf16>
    %16 = vector.shape_cast %15 : vector<1x16x16xbf16> to vector<16x16xbf16>
    %cst_17 = arith.constant dense<0.000000e+00> : vector<16x224xf32>
    %17 = tpu.matmul %16, %14, %cst_17 {dimension_numbers = #tpu.dot_dimension_numbers<[1], [0], [0], [1], [0, 0, 1, 1], [], []>} : vector<16x16xbf16>, vector<16x224xbf16>, vector<16x224xf32> -> vector<16x224xf32>
    %18 = arith.addf %12, %17 : vector<16x224xf32>
    %c0_18 = arith.constant 0 : index
    %c0_19 = arith.constant 0 : index
    %c16 = arith.constant 16 : index
    %19 = vector.load %arg2[%c0_18, %c0_19, %c16] : memref<1x16x258xbf16, #tpu.memory_space<vmem>>, vector<1x16x224xbf16>
    %20 = vector.shape_cast %19 : vector<1x16x224xbf16> to vector<16x224xbf16>
    %c3 = arith.constant 3 : index
    %c0_20 = arith.constant 0 : index
    %c0_21 = arith.constant 0 : index
    %21 = vector.load %arg1[%c3, %c0_20, %c0_21] : memref<9x16x16xbf16, #tpu.memory_space<vmem>>, vector<1x16x16xbf16>
    %22 = vector.shape_cast %21 : vector<1x16x16xbf16> to vector<16x16xbf16>
    %cst_22 = arith.constant dense<0.000000e+00> : vector<16x224xf32>
    %23 = tpu.matmul %22, %20, %cst_22 {dimension_numbers = #tpu.dot_dimension_numbers<[1], [0], [0], [1], [0, 0, 1, 1], [], []>} : vector<16x16xbf16>, vector<16x224xbf16>, vector<16x224xf32> -> vector<16x224xf32>
    %24 = arith.addf %18, %23 : vector<16x224xf32>
    %c0_23 = arith.constant 0 : index
    %c0_24 = arith.constant 0 : index
    %c17 = arith.constant 17 : index
    %25 = vector.load %arg2[%c0_23, %c0_24, %c17] : memref<1x16x258xbf16, #tpu.memory_space<vmem>>, vector<1x16x224xbf16>
    %26 = vector.shape_cast %25 : vector<1x16x224xbf16> to vector<16x224xbf16>
    %c4 = arith.constant 4 : index
    %c0_25 = arith.constant 0 : index
    %c0_26 = arith.constant 0 : index
    %27 = vector.load %arg1[%c4, %c0_25, %c0_26] : memref<9x16x16xbf16, #tpu.memory_space<vmem>>, vector<1x16x16xbf16>
    %28 = vector.shape_cast %27 : vector<1x16x16xbf16> to vector<16x16xbf16>
    %cst_27 = arith.constant dense<0.000000e+00> : vector<16x224xf32>
    %29 = tpu.matmul %28, %26, %cst_27 {dimension_numbers = #tpu.dot_dimension_numbers<[1], [0], [0], [1], [0, 0, 1, 1], [], []>} : vector<16x16xbf16>, vector<16x224xbf16>, vector<16x224xf32> -> vector<16x224xf32>
    %30 = arith.addf %24, %29 : vector<16x224xf32>
    %c0_28 = arith.constant 0 : index
    %c0_29 = arith.constant 0 : index
    %c18 = arith.constant 18 : index
    %31 = vector.load %arg2[%c0_28, %c0_29, %c18] : memref<1x16x258xbf16, #tpu.memory_space<vmem>>, vector<1x16x224xbf16>
    %32 = vector.shape_cast %31 : vector<1x16x224xbf16> to vector<16x224xbf16>
    %c5 = arith.constant 5 : index
    %c0_30 = arith.constant 0 : index
    %c0_31 = arith.constant 0 : index
    %33 = vector.load %arg1[%c5, %c0_30, %c0_31] : memref<9x16x16xbf16, #tpu.memory_space<vmem>>, vector<1x16x16xbf16>
    %34 = vector.shape_cast %33 : vector<1x16x16xbf16> to vector<16x16xbf16>
    %cst_32 = arith.constant dense<0.000000e+00> : vector<16x224xf32>
    %35 = tpu.matmul %34, %32, %cst_32 {dimension_numbers = #tpu.dot_dimension_numbers<[1], [0], [0], [1], [0, 0, 1, 1], [], []>} : vector<16x16xbf16>, vector<16x224xbf16>, vector<16x224xf32> -> vector<16x224xf32>
    %36 = arith.addf %30, %35 : vector<16x224xf32>
    %c0_33 = arith.constant 0 : index
    %c0_34 = arith.constant 0 : index
    %c32 = arith.constant 32 : index
    %37 = vector.load %arg2[%c0_33, %c0_34, %c32] : memref<1x16x258xbf16, #tpu.memory_space<vmem>>, vector<1x16x224xbf16>
    %38 = vector.shape_cast %37 : vector<1x16x224xbf16> to vector<16x224xbf16>
    %c6 = arith.constant 6 : index
    %c0_35 = arith.constant 0 : index
    %c0_36 = arith.constant 0 : index
    %39 = vector.load %arg1[%c6, %c0_35, %c0_36] : memref<9x16x16xbf16, #tpu.memory_space<vmem>>, vector<1x16x16xbf16>
    %40 = vector.shape_cast %39 : vector<1x16x16xbf16> to vector<16x16xbf16>
    %cst_37 = arith.constant dense<0.000000e+00> : vector<16x224xf32>
    %41 = tpu.matmul %40, %38, %cst_37 {dimension_numbers = #tpu.dot_dimension_numbers<[1], [0], [0], [1], [0, 0, 1, 1], [], []>} : vector<16x16xbf16>, vector<16x224xbf16>, vector<16x224xf32> -> vector<16x224xf32>
    %42 = arith.addf %36, %41 : vector<16x224xf32>
    %c0_38 = arith.constant 0 : index
    %c0_39 = arith.constant 0 : index
    %c33 = arith.constant 33 : index
    %43 = vector.load %arg2[%c0_38, %c0_39, %c33] : memref<1x16x258xbf16, #tpu.memory_space<vmem>>, vector<1x16x224xbf16>
    %44 = vector.shape_cast %43 : vector<1x16x224xbf16> to vector<16x224xbf16>
    %c7 = arith.constant 7 : index
    %c0_40 = arith.constant 0 : index
    %c0_41 = arith.constant 0 : index
    %45 = vector.load %arg1[%c7, %c0_40, %c0_41] : memref<9x16x16xbf16, #tpu.memory_space<vmem>>, vector<1x16x16xbf16>
    %46 = vector.shape_cast %45 : vector<1x16x16xbf16> to vector<16x16xbf16>
    %cst_42 = arith.constant dense<0.000000e+00> : vector<16x224xf32>
    %47 = tpu.matmul %46, %44, %cst_42 {dimension_numbers = #tpu.dot_dimension_numbers<[1], [0], [0], [1], [0, 0, 1, 1], [], []>} : vector<16x16xbf16>, vector<16x224xbf16>, vector<16x224xf32> -> vector<16x224xf32>
    %48 = arith.addf %42, %47 : vector<16x224xf32>
    %c0_43 = arith.constant 0 : index
    %c0_44 = arith.constant 0 : index
    %c34 = arith.constant 34 : index
    %49 = vector.load %arg2[%c0_43, %c0_44, %c34] : memref<1x16x258xbf16, #tpu.memory_space<vmem>>, vector<1x16x224xbf16>
    %50 = vector.shape_cast %49 : vector<1x16x224xbf16> to vector<16x224xbf16>
    %c8 = arith.constant 8 : index
    %c0_45 = arith.constant 0 : index
    %c0_46 = arith.constant 0 : index
    %51 = vector.load %arg1[%c8, %c0_45, %c0_46] : memref<9x16x16xbf16, #tpu.memory_space<vmem>>, vector<1x16x16xbf16>
    %52 = vector.shape_cast %51 : vector<1x16x16xbf16> to vector<16x16xbf16>
    %cst_47 = arith.constant dense<0.000000e+00> : vector<16x224xf32>
    %53 = tpu.matmul %52, %50, %cst_47 {dimension_numbers = #tpu.dot_dimension_numbers<[1], [0], [0], [1], [0, 0, 1, 1], [], []>} : vector<16x16xbf16>, vector<16x224xbf16>, vector<16x224xf32> -> vector<16x224xf32>
    %54 = arith.addf %48, %53 : vector<16x224xf32>
    %55 = arith.truncf %54 : vector<16x224xf32> to vector<16x224xbf16>
    %c0_48 = arith.constant 0 : index
    %c0_49 = arith.constant 0 : index
    %c0_50 = arith.constant 0 : index
    %56 = vector.load %arg3[%c0_48, %c0_49, %c0_50] : memref<1x16x224xbf16, #tpu.memory_space<vmem>>, vector<1x16x224xbf16>
    %57 = vector.shape_cast %56 : vector<1x16x224xbf16> to vector<16x224xbf16>
    %58 = vector.shape_cast %55 : vector<16x224xbf16> to vector<1x16x224xbf16>
    tpu.vector_store %arg3[%c0_48, %c0_49, %c0_50], %58 {strides = array<i32>} : memref<1x16x224xbf16, #tpu.memory_space<vmem>>, vector<1x16x224xbf16>,
    %59 = tpu.iota {dimensions = array<i32: 1>} : vector<1x224xi32>
    %c16_i32 = arith.constant 16 : i32
    %c0_i32 = arith.constant 0 : i32
    %60 = arith.cmpi eq, %c16_i32, %c0_i32 : i32
    %c1_i32 = arith.constant 1 : i32
    %61 = arith.select %60, %c1_i32, %c16_i32 : i32
    %62 = vector.broadcast %61 : i32 to vector<1x224xi32>
    %63 = arith.remsi %59, %62 : vector<1x224xi32>
    %c0_i32_51 = arith.constant 0 : i32
    %64 = vector.broadcast %c0_i32_51 : i32 to vector<1x224xi32>
    %65 = arith.cmpi ne, %63, %64 : vector<1x224xi32>
    %c0_i32_52 = arith.constant 0 : i32
    %66 = vector.broadcast %c0_i32_52 : i32 to vector<1x224xi32>
    %67 = arith.cmpi slt, %63, %66 : vector<1x224xi32>
    %c0_i32_53 = arith.constant 0 : i32
    %68 = arith.cmpi slt, %61, %c0_i32_53 : i32
    %69 = vector.broadcast %68 : i1 to vector<1x224xi1>
    %70 = vector.broadcast %69 : vector<1x224xi1> to vector<1x224xi1>
    %71 = arith.xori %67, %70 : vector<1x224xi1>
    %72 = arith.andi %71, %65 : vector<1x224xi1>
    %73 = vector.broadcast %61 : i32 to vector<1x224xi32>
    %74 = arith.addi %63, %73 : vector<1x224xi32>
    %75 = arith.select %72, %74, %63 : vector<1x224xi1>, vector<1x224xi32>
    %c14_i32 = arith.constant 14 : i32
    %76 = vector.broadcast %c14_i32 : i32 to vector<1x224xi32>
    %77 = arith.cmpi slt, %75, %76 : vector<1x224xi32>
    %cst_54 = arith.constant 0.000000e+00 : f32
    %78 = vector.shape_cast %77 : vector<1x224xi1> to vector<1x224xi1>
    %79 = vector.broadcast %78 : vector<1x224xi1> to vector<16x224xi1>
    %80 = vector.broadcast %cst_54 : f32 to vector<16x224xf32>
    %81 = arith.select %79, %54, %80 : vector<16x224xi1>, vector<16x224xf32>
    %cst_55 = arith.constant dense<0.000000e+00> : vector<16xf32>
    %82 = vector.multi_reduction <add>, %81, %cst_55 [1] : vector<16x224xf32> to vector<16xf32>
    %83 = vector.shape_cast %82 : vector<16xf32> to vector<16x1xf32>
    %c0_56 = arith.constant 0 : index
    %c0_57 = arith.constant 0 : index
    %c0_58 = arith.constant 0 : index
    %84 = vector.load %arg4[%c0_56, %c0_57, %c0_58] : memref<1x16x1xf32, #tpu.memory_space<vmem>>, vector<1x16x1xf32>
    %85 = vector.shape_cast %84 : vector<1x16x1xf32> to vector<16x1xf32>
    %86 = vector.shape_cast %83 : vector<16x1xf32> to vector<1x16x1xf32>
    tpu.vector_store %arg4[%c0_56, %c0_57, %c0_58], %86 {strides = array<i32>} : memref<1x16x1xf32, #tpu.memory_space<vmem>>, vector<1x16x1xf32>,
    %87 = arith.mulf %81, %81 : vector<16x224xf32>
    %cst_59 = arith.constant dense<0.000000e+00> : vector<16xf32>
    %88 = vector.multi_reduction <add>, %87, %cst_59 [1] : vector<16x224xf32> to vector<16xf32>
    %89 = vector.shape_cast %88 : vector<16xf32> to vector<16x1xf32>
    %c0_60 = arith.constant 0 : index
    %c0_61 = arith.constant 0 : index
    %c0_62 = arith.constant 0 : index
    %90 = vector.load %arg5[%c0_60, %c0_61, %c0_62] : memref<1x16x1xf32, #tpu.memory_space<vmem>>, vector<1x16x1xf32>
    %91 = vector.shape_cast %90 : vector<1x16x1xf32> to vector<16x1xf32>
    %92 = vector.shape_cast %89 : vector<16x1xf32> to vector<1x16x1xf32>
    tpu.vector_store %arg5[%c0_60, %c0_61, %c0_62], %92 {strides = array<i32>} : memref<1x16x1xf32, #tpu.memory_space<vmem>>, vector<1x16x1xf32>,
    return
  }
  func.func @transform_0(%arg0: i32) -> (i32, i32, i32) {
    %c0_i32 = arith.constant 0 : i32
    %c0_i32_0 = arith.constant 0 : i32
    %c0_i32_1 = arith.constant 0 : i32
    %c0_i32_2 = arith.constant 0 : i32
    return %c0_i32, %c0_i32_0, %c0_i32_1 : i32, i32, i32
  }
  func.func @transform_1(%arg0: i32) -> (i32, i32, i32) {
    %c0_i32 = arith.constant 0 : i32
    %c0_i32_0 = arith.constant 0 : i32
    %c0_i32_1 = arith.constant 0 : i32
    return %arg0, %c0_i32, %c0_i32_0 : i32, i32, i32
  }
  func.func @transform_2(%arg0: i32) -> (i32, i32, i32) {
    %c0_i32 = arith.constant 0 : i32
    %c0_i32_0 = arith.constant 0 : i32
    %c0_i32_1 = arith.constant 0 : i32
    return %arg0, %c0_i32, %c0_i32_0 : i32, i32, i32
  }
  func.func @transform_3(%arg0: i32) -> (i32, i32, i32) {
    %c0_i32 = arith.constant 0 : i32
    %c0_i32_0 = arith.constant 0 : i32
    %c0_i32_1 = arith.constant 0 : i32
    return %arg0, %c0_i32, %c0_i32_0 : i32, i32, i32
  }
  func.func @transform_4(%arg0: i32) -> (i32, i32, i32) {
    %c0_i32 = arith.constant 0 : i32
    %c0_i32_0 = arith.constant 0 : i32
    %c0_i32_1 = arith.constant 0 : i32
    return %arg0, %c0_i32, %c0_i32_0 : i32, i32, i32
  }
}

</mosaic_0001>

<llo_original>
// kernel: conv_bn_relu.1
$region0: #{conv_bn_relu.1}
  #allocation0 [shape = 'u32[]', space=smem, size = 0x4, offset = 0x4, fixed_abs, tag = 'smem constant byte address 0x4 - core index']
  #allocation1 [shape = 'u32[144,128]{1,0:T(1,128)}', space=vmem, size = 0x12000, scoped, tag = 'internal scratch']
  %s0 = inlined_call_operand.vmem [shape: bf16[9,16,16], index: 0, kind: input, shape index: {}]
  %s1 = inlined_call_operand.vmem [shape: bf16[2,16,258], index: 1, kind: input, shape index: {}]
  %s2 = inlined_call_operand.vmem [shape: bf16[2,16,224], index: 2, kind: output, shape index: {0}]
  %s3 = inlined_call_operand.vmem [shape: f32[2,16,1], index: 3, kind: output, shape index: {1}]
  %s4 = inlined_call_operand.vmem [shape: f32[2,16,1], index: 4, kind: output, shape index: {2}]
  %5 = xla_tuple %s2, %s3, %s4
  %s6 = sld [smem:[#allocation0]]
  $region57: #{conv_bn_relu.1} parent=0
    _
  %s8 = ssub.s32 1, %s6
  %s9 = scalar_select 0, %s8, %s6
  loop: start=0, step=1, limit=4
  $region2: #{conv_bn_relu.1} parent=0 // loop_pre_header
    _
  $region3: #{conv_bn_relu.1} parent=0 // loop_header
    %s11 = sphi 0, %s15
    %p12 = scmp.ge.s32.totalorder %s11, 4
    %s19 = sphi 0, %s19
    %s21 = sphi 0, %s19
    %s22 = sphi 0, %s21
    %s36 = sphi 0, %s22
    %s42 = sphi 0, %s44
    %s45 = sphi 0, %s42
    %s46 = sphi 0, %s45
    %s62 = sphi 0, %s46
    %s68 = sphi 0, %s70
    %s71 = sphi 0, %s68
    %s72 = sphi 0, %s71
    %s88 = sphi 0, %s72
    %s94 = sphi 0, %s96
    %s97 = sphi 0, %s94
    %s98 = sphi 0, %s97
    %s114 = sphi 0, %s98
    %s120 = sphi 0, %s122
    %s123 = sphi 0, %s120
    %s124 = sphi 0, %s123
    %s140 = sphi 0, %s124
  $region4: #{conv_bn_relu.1} parent=0 // loop_header_branch
    %14 = sbr.rel (%p12) target = $region8
  $region5: #{conv_bn_relu.1} parent=0 // loop_body
    %s16 = ssub.s32 %s11, 1
    %s17 = ssub.s32 %s11, 2
    %s18 = sadd.s32 %s11, 1
    %s20 = sadd.s32 %s19, 1
    %p23 = scmp.eq.s32.totalorder %s11, 1
    %p24 = scmp.ne.s32.totalorder %s19, %s21
    %p25 = scmp.eq.s32.totalorder %s11, 0
    %p26 = por %p24, %p25
    %p27 = scmp.ne.s32.totalorder %s19, %s21
    %p28 = scmp.eq.s32.totalorder %s16, 1
    %p29 = por %p27, %p28
    %p30 = scmp.ne.s32.totalorder %s21, %s22
    %p31 = scmp.eq.s32.totalorder %s16, 0
    %p32 = por %p30, %p31
    %p33 = scmp.ne.s32.totalorder %s21, %s22
    %p34 = scmp.eq.s32.totalorder %s17, 1
    %p35 = por %p33, %p34
    %p37 = scmp.ne.s32.totalorder %s22, %s36
    %p38 = scmp.eq.s32.totalorder %s17, 0
    %p39 = por %p37, %p38
    %s40 = ssub.s32 %s11, %s18
    %p41 = scmp.eq.s32.totalorder %s40, 0
    %s43 = sadd.s32 %s42, 1
    %s44 = scalar_select %p41, %s42, %s43
    %p47 = pneg %p41
    %p48 = scmp.eq.s32.totalorder %s11, 1
    %p49 = por %p47, %p48
    %p50 = scmp.ne.s32.totalorder %s42, %s45
    %p51 = scmp.eq.s32.totalorder %s11, 0
    %p52 = por %p50, %p51
    %p53 = scmp.ne.s32.totalorder %s42, %s45
    %p54 = scmp.eq.s32.totalorder %s16, 1
    %p55 = por %p53, %p54
    %p56 = scmp.ne.s32.totalorder %s45, %s46
    %p57 = scmp.eq.s32.totalorder %s16, 0
    %p58 = por %p56, %p57
    %p59 = scmp.ne.s32.totalorder %s45, %s46
    %p60 = scmp.eq.s32.totalorder %s17, 1
    %p61 = por %p59, %p60
    %p63 = scmp.ne.s32.totalorder %s46, %s62
    %p64 = scmp.eq.s32.totalorder %s17, 0
    %p65 = por %p63, %p64
    %s66 = ssub.s32 %s11, %s18
    %p67 = scmp.eq.s32.totalorder %s66, 0
    %s69 = sadd.s32 %s68, 1
    %s70 = scalar_select %p67, %s68, %s69
    %p73 = pneg %p67
    %p74 = scmp.eq.s32.totalorder %s11, 1
    %p75 = por %p73, %p74
    %p76 = scmp.ne.s32.totalorder %s68, %s71
    %p77 = scmp.eq.s32.totalorder %s11, 0
    %p78 = por %p76, %p77
    %p79 = scmp.ne.s32.totalorder %s68, %s71
    %p80 = scmp.eq.s32.totalorder %s16, 1
    %p81 = por %p79, %p80
    %p82 = scmp.ne.s32.totalorder %s71, %s72
    %p83 = scmp.eq.s32.totalorder %s16, 0
    %p84 = por %p82, %p83
    %p85 = scmp.ne.s32.totalorder %s71, %s72
    %p86 = scmp.eq.s32.totalorder %s17, 1
    %p87 = por %p85, %p86
    %p89 = scmp.ne.s32.totalorder %s72, %s88
    %p90 = scmp.eq.s32.totalorder %s17, 0
    %p91 = por %p89, %p90
    %s92 = ssub.s32 %s11, %s18
    %p93 = scmp.eq.s32.totalorder %s92, 0
    %s95 = sadd.s32 %s94, 1
    %s96 = scalar_select %p93, %s94, %s95
    %p99 = pneg %p93
    %p100 = scmp.eq.s32.totalorder %s11, 1
    %p101 = por %p99, %p100
    %p102 = scmp.ne.s32.totalorder %s94, %s97
    %p103 = scmp.eq.s32.totalorder %s11, 0
    %p104 = por %p102, %p103
    %p105 = scmp.ne.s32.totalorder %s94, %s97
    %p106 = scmp.eq.s32.totalorder %s16, 1
    %p107 = por %p105, %p106
    %p108 = scmp.ne.s32.totalorder %s97, %s98
    %p109 = scmp.eq.s32.totalorder %s16, 0
    %p110 = por %p108, %p109
    %p111 = scmp.ne.s32.totalorder %s97, %s98
    %p112 = scmp.eq.s32.totalorder %s17, 1
    %p113 = por %p111, %p112
    %p115 = scmp.ne.s32.totalorder %s98, %s114
    %p116 = scmp.eq.s32.totalorder %s17, 0
    %p117 = por %p115, %p116
    %s118 = ssub.s32 %s11, %s18
    %p119 = scmp.eq.s32.totalorder %s118, 0
    %s121 = sadd.s32 %s120, 1
    %s122 = scalar_select %p119, %s120, %s121
    %p125 = pneg %p119
    %p126 = scmp.eq.s32.totalorder %s11, 1
    %p127 = por %p125, %p126
    %p128 = scmp.ne.s32.totalorder %s120, %s123
    %p129 = scmp.eq.s32.totalorder %s11, 0
    %p130 = por %p128, %p129
    %p131 = scmp.ne.s32.totalorder %s120, %s123
    %p132 = scmp.eq.s32.totalorder %s16, 1
    %p133 = por %p131, %p132
    %p134 = scmp.ne.s32.totalorder %s123, %s124
    %p135 = scmp.eq.s32.totalorder %s16, 0
    %p136 = por %p134, %p135
    %p137 = scmp.ne.s32.totalorder %s123, %s124
    %p138 = scmp.eq.s32.totalorder %s17, 1
    %p139 = por %p137, %p138
    %p141 = scmp.ne.s32.totalorder %s124, %s140
    %p142 = scmp.eq.s32.totalorder %s17, 0
    %p143 = por %p141, %p142
    %p144 = scmp.le.s32.totalorder 1, %s11
    %p145 = scmp.lt.s32.totalorder %s11, 3
    %p146 = pnand %p144, %p145
    %p147 = pneg %p146
    // Predicated region
    $region9: #{conv_bn_relu.1} parent=5 // pred_check
      _
    $region10: #{conv_bn_relu.1} parent=5 // pred_check_branch
      %149 = sbr.rel (%p146) target = $region12
    $region11: #{conv_bn_relu.1} parent=5 // pred_region
      %s150 = ssub.s32 %s11, 1
      // Predicated region
      $region13: #{conv_bn_relu.1} parent=11 // pred_check
        %p151 = pneg %p32
      $region14: #{conv_bn_relu.1} parent=11 // pred_check_branch
        %153 = sbr.rel (%p151) target = $region16
      $region15: #{conv_bn_relu.1} parent=11 // pred_region
        _
      $region16: #{conv_bn_relu.1} parent=11 // pred_fallthru
        _
    $region12: #{conv_bn_relu.1} parent=5 // pred_fallthru
      _
    %p154 = scmp.lt.s32.totalorder %s11, 2
    // Predicated region
    $region17: #{conv_bn_relu.1} parent=5 // pred_check
      %p155 = pneg %p154
    $region18: #{conv_bn_relu.1} parent=5 // pred_check_branch
      %157 = sbr.rel (%p155) target = $region20
    $region19: #{conv_bn_relu.1} parent=5 // pred_region
      // Predicated region
      $region21: #{conv_bn_relu.1} parent=19 // pred_check
        %p158 = pneg %p52
      $region22: #{conv_bn_relu.1} parent=19 // pred_check_branch
        %160 = sbr.rel (%p158) target = $region24
      $region23: #{conv_bn_relu.1} parent=19 // pred_region
        %p161 = scmp.lt.s32.totalorder %s11, 1
        %s162 = scalar_select %p161, %s11, 1
        %s163 = smul.addr %s162, 6
        %s164 = smul.addr %s163, 4
        %s165 = scalar_lea.vmem %s1, %s164
      $region24: #{conv_bn_relu.1} parent=19 // pred_fallthru
        _
    $region20: #{conv_bn_relu.1} parent=5 // pred_fallthru
      _
    %p166 = scmp.le.s32.totalorder 1, %s11
    %p167 = scmp.lt.s32.totalorder %s11, 3
    %p168 = pnand %p166, %p167
    %p169 = pneg %p168
    // Predicated region
    $region25: #{conv_bn_relu.1} parent=5 // pred_check
      _
    $region26: #{conv_bn_relu.1} parent=5 // pred_check_branch
      %171 = sbr.rel (%p168) target = $region28
    $region27: #{conv_bn_relu.1} parent=5 // pred_region
      %s172 = ssub.s32 %s11, 1
      %p173 = pneg %p32
      %p174 = pneg %p29
      %p175 = scmp.lt.s32.totalorder %s16, 1
      %s176 = scalar_select %p175, %s16, 1
      %s177 = smul.addr %s176, 6
      %s178 = smul.addr %s177, 4
      %s179 = scalar_lea.vmem %s1, %s178
      %p180 = pneg %p58
      %p181 = pneg %p55
      %p182 = pneg %p84
      %p183 = pneg %p81
      %p184 = scmp.lt.s32.totalorder %s16, 1
      %s185 = scalar_select %p184, %s16, 1
      %s186 = smul.addr %s185, 4
      %s187 = smul.addr %s186, 4
      %s188 = scalar_lea.vmem %s2, %s187
      %p189 = pneg %p110
      %p190 = pneg %p107
      %p191 = scmp.lt.s32.totalorder %s16, 1
      %s192 = scalar_select %p191, %s16, 1
      %s193 = smul.addr %s192, 2
      %s194 = smul.addr %s193, 8
      %s195 = scalar_lea.vmem %s3, %s194
      %p196 = pneg %p136
      %p197 = pneg %p133
      %p198 = scmp.lt.s32.totalorder %s16, 1
      %s199 = scalar_select %p198, %s16, 1
      %s200 = smul.addr %s199, 2
      %s201 = smul.addr %s200, 8
      %s202 = scalar_lea.vmem %s4, %s201
      %p203 = scmp.lt.s32.totalorder %s16, 1
      %s204 = scalar_select %p203, %s16, 1
      %s205 = smul.addr %s204, 6
      %s206 = smul.addr %s205, 4
      %s207 = scalar_lea.vmem %s1, %s206
      %p208 = scmp.lt.s32.totalorder %s16, 1
      %s209 = scalar_select %p208, %s16, 1
      %s210 = smul.addr %s209, 4
      %s211 = smul.addr %s210, 4
      %s212 = scalar_lea.vmem %s2, %s211
      %p213 = scmp.lt.s32.totalorder %s16, 1
      %s214 = scalar_select %p213, %s16, 1
      %s215 = smul.addr %s214, 2
      %s216 = smul.addr %s215, 8
      %s217 = scalar_lea.vmem %s3, %s216
      %p218 = scmp.lt.s32.totalorder %s16, 1
      %s219 = scalar_select %p218, %s16, 1
      %s220 = smul.addr %s219, 2
      %s221 = smul.addr %s220, 8
      %s222 = scalar_lea.vmem %s4, %s221
      %v224 = vld [vmem:[%s207] sm:$0xff]
      %v225 = vld [vmem:[%s207 + $0xc] sm:$0xff]
      %v226 = vld [vmem:[%s0] sm:$0xf]
      %v227 = vld [vmem:[%s0 + $0x4] sm:$0xf]
      %s228 = scalar_lea.vmem %s0, 8
      %v229 = vld [vmem:[%s228] sm:$0xf]
      %v230 = vld [vmem:[%s228 + $0x4] sm:$0xf]
      %v233 = vunpack.c.l.b16 %v229
      %v234 = vunpack.c.l.b16 %v230
      %v235 = vpack.c.b16 %v234, %v233
      %v238 = vunpack.c.l.b16 %v224
      %v239 = vunpack.c.h.b16 %v224
      %v240 = vunpack.c.l.b16 %v225
      %v241 = vunpack.c.h.b16 %v225
      %v242 = vpack.c.b16 %v240, %v238
      %v243 = vpack.c.b16 %v241, %v239
      %244 = vrot.lane.b32.xlu0 %v242, 127
      %v245 = vpop.permute.xlu0 %244
      %246 = vrot.lane.b32.xlu0 %v243, 127
      %v247 = vpop.permute.xlu0 %246
      %vm248 = vcmask 1039360
      %v249 = vsel %vm248, %v245, %v247
      %vm252 = vcmask 130048
      %v254 = vsel %vm252, %v235, 0
      %256 = vmatprep.subr.bf16.mxu0 %v247
      %257 = vmatpush1.bf16.msra.mxu0 %v249
      %258 = vmatprep.subr.bf16.mxu0 0
      %259 = vmatpush1.bf16.msra.mxu0 0
      %260 = vmatprep.subr.bf16.mxu0 0
      %261 = vmatpush1.bf16.msra.mxu0 0
      %262 = vmatprep.subr.bf16.mxu0 0
      %263 = vmatpush1.bf16.msra.mxu0 0
      %264 = vmatprep.subr.bf16.mxu0 0
      %265 = vmatpush1.bf16.msra.mxu0 0
      %266 = vmatprep.subr.bf16.mxu0 0
      %267 = vmatpush1.bf16.msra.mxu0 0
      %268 = vmatprep.subr.bf16.mxu0 0
      %269 = vmatpush1.bf16.msra.mxu0 0
      %270 = vmatprep.subr.bf16.mxu0 0
      %271 = vmatpush1.bf16.msra.mxu0 0
      %272 = vmatprep.subr.bf16.mxu0 0
      %273 = vmatpush1.bf16.msra.mxu0 0
      %274 = vmatprep.subr.bf16.mxu0 0
      %275 = vmatpush1.bf16.msra.mxu0 0
      %276 = vmatprep.subr.bf16.mxu0 0
      %277 = vmatpush1.bf16.msra.mxu0 0
      %278 = vmatprep.subr.bf16.mxu0 0
      %279 = vmatpush1.bf16.msra.mxu0 0
      %280 = vmatprep.subr.bf16.mxu0 0
      %281 = vmatpush1.bf16.msra.mxu0 0
      %282 = vmatprep.subr.bf16.mxu0 0
      %283 = vmatpush1.bf16.msra.mxu0 0
      %284 = vmatprep.subr.bf16.mxu0 0
      %285 = vmatpush1.bf16.msra.mxu0 0
      %286 = vmatprep.subr.bf16.mxu0 0
      %287 = vmatpush1.bf16.msra.mxu0 0
      %288 = vmatprep.mubr.bf16.mxu0 0
      %289 = vmatmul.mubr.bf16.gmra.mrb[0].mxu0 %v254
      %v290 = vpop.f32.mrb[0].mxu0
      %v291 = vadd.f32 0.0, %v290
      %v292 = vpop.f32.mrb[0].mxu0
      %v293 = vadd.f32 0.0, %v292
      %v294 = vpop.f32.mrb[0].mxu0
      %v295 = vadd.f32 0.0, %v294
      %v296 = vpop.f32.mrb[0].mxu0
      %v297 = vadd.f32 0.0, %v296
      %298 = vdwg.mxu0
      %v301 = vunpack.c.l.b16 %v226
      %v302 = vunpack.c.l.b16 %v227
      %v303 = vpack.c.b16 %v302, %v301
      %v307 = vsel %vm252, %v303, 0
      %309 = vmatprep.subr.bf16.mxu0 %v243
      %310 = vmatpush1.bf16.msra.mxu0 %v242
      %311 = vmatprep.subr.bf16.mxu0 0
      %312 = vmatpush1.bf16.msra.mxu0 0
      %313 = vmatprep.subr.bf16.mxu0 0
      %314 = vmatpush1.bf16.msra.mxu0 0
      %315 = vmatprep.subr.bf16.mxu0 0
      %316 = vmatpush1.bf16.msra.mxu0 0
      %317 = vmatprep.subr.bf16.mxu0 0
      %318 = vmatpush1.bf16.msra.mxu0 0
      %319 = vmatprep.subr.bf16.mxu0 0
      %320 = vmatpush1.bf16.msra.mxu0 0
      %321 = vmatprep.subr.bf16.mxu0 0
      %322 = vmatpush1.bf16.msra.mxu0 0
      %323 = vmatprep.subr.bf16.mxu0 0
      %324 = vmatpush1.bf16.msra.mxu0 0
      %325 = vmatprep.subr.bf16.mxu0 0
      %326 = vmatpush1.bf16.msra.mxu0 0
      %327 = vmatprep.subr.bf16.mxu0 0
      %328 = vmatpush1.bf16.msra.mxu0 0
      %329 = vmatprep.subr.bf16.mxu0 0
      %330 = vmatpush1.bf16.msra.mxu0 0
      %331 = vmatprep.subr.bf16.mxu0 0
      %332 = vmatpush1.bf16.msra.mxu0 0
      %333 = vmatprep.subr.bf16.mxu0 0
      %334 = vmatpush1.bf16.msra.mxu0 0
      %335 = vmatprep.subr.bf16.mxu0 0
      %336 = vmatpush1.bf16.msra.mxu0 0
      %337 = vmatprep.subr.bf16.mxu0 0
      %338 = vmatpush1.bf16.msra.mxu0 0
      %339 = vmatprep.subr.bf16.mxu0 0
      %340 = vmatpush1.bf16.msra.mxu0 0
      %341 = vmatprep.mubr.bf16.mxu0 0
      %342 = vmatmul.mubr.bf16.gmra.mrb[0].mxu0 %v307
      %v343 = vpop.f32.mrb[0].mxu0
      %v344 = vadd.f32 %v291, %v343
      %v345 = vpop.f32.mrb[0].mxu0
      %v346 = vadd.f32 %v293, %v345
      %v347 = vpop.f32.mrb[0].mxu0
      %v348 = vadd.f32 %v295, %v347
      %v349 = vpop.f32.mrb[0].mxu0
      %v350 = vadd.f32 %v297, %v349
      %351 = vdwg.mxu0
      %s352 = scalar_lea.vmem %s0, 16
      %v353 = vld [vmem:[%s352] sm:$0xf]
      %v354 = vld [vmem:[%s352 + $0x4] sm:$0xf]
      %v357 = vunpack.c.l.b16 %v353
      %v358 = vunpack.c.l.b16 %v354
      %v359 = vpack.c.b16 %v358, %v357
      %360 = vrot.lane.b32.xlu0 %v242, 126
      %v361 = vpop.permute.xlu0 %360
      %362 = vrot.lane.b32.xlu0 %v243, 126
      %v363 = vpop.permute.xlu0 %362
      %vm364 = vcmask 1031168
      %v365 = vsel %vm364, %v361, %v363
      %v369 = vsel %vm252, %v359, 0
      %371 = vmatprep.subr.bf16.mxu0 %v363
      %372 = vmatpush1.bf16.msra.mxu0 %v365
      %373 = vmatprep.subr.bf16.mxu0 0
      %374 = vmatpush1.bf16.msra.mxu0 0
      %375 = vmatprep.subr.bf16.mxu0 0
      %376 = vmatpush1.bf16.msra.mxu0 0
      %377 = vmatprep.subr.bf16.mxu0 0
      %378 = vmatpush1.bf16.msra.mxu0 0
      %379 = vmatprep.subr.bf16.mxu0 0
      %380 = vmatpush1.bf16.msra.mxu0 0
      %381 = vmatprep.subr.bf16.mxu0 0
      %382 = vmatpush1.bf16.msra.mxu0 0
      %383 = vmatprep.subr.bf16.mxu0 0
      %384 = vmatpush1.bf16.msra.mxu0 0
      %385 = vmatprep.subr.bf16.mxu0 0
      %386 = vmatpush1.bf16.msra.mxu0 0
      %387 = vmatprep.subr.bf16.mxu0 0
      %388 = vmatpush1.bf16.msra.mxu0 0
      %389 = vmatprep.subr.bf16.mxu0 0
      %390 = vmatpush1.bf16.msra.mxu0 0
      %391 = vmatprep.subr.bf16.mxu0 0
      %392 = vmatpush1.bf16.msra.mxu0 0
      %393 = vmatprep.subr.bf16.mxu0 0
      %394 = vmatpush1.bf16.msra.mxu0 0
      %395 = vmatprep.subr.bf16.mxu0 0
      %396 = vmatpush1.bf16.msra.mxu0 0
      %397 = vmatprep.subr.bf16.mxu0 0
      %398 = vmatpush1.bf16.msra.mxu0 0
      %399 = vmatprep.subr.bf16.mxu0 0
      %400 = vmatpush1.bf16.msra.mxu0 0
      %401 = vmatprep.subr.bf16.mxu0 0
      %402 = vmatpush1.bf16.msra.mxu0 0
      %403 = vmatprep.mubr.bf16.mxu0 0
      %404 = vmatmul.mubr.bf16.gmra.mrb[0].mxu0 %v369
      %v405 = vpop.f32.mrb[0].mxu0
      %v406 = vadd.f32 0.0, %v405
      %v407 = vpop.f32.mrb[0].mxu0
      %v408 = vadd.f32 0.0, %v407
      %v409 = vpop.f32.mrb[0].mxu0
      %v410 = vadd.f32 0.0, %v409
      %v411 = vpop.f32.mrb[0].mxu0
      %v412 = vadd.f32 0.0, %v411
      %413 = vdwg.mxu0
      %v414 = vadd.f32 %v344, %v406
      %v415 = vadd.f32 %v346, %v408
      %v416 = vadd.f32 %v348, %v410
      %v417 = vadd.f32 %v350, %v412
      %s418 = scalar_lea.vmem %s0, 24
      %v419 = vld [vmem:[%s418] sm:$0xf]
      %v420 = vld [vmem:[%s418 + $0x4] sm:$0xf]
      %v423 = vunpack.c.l.b16 %v419
      %v424 = vunpack.c.l.b16 %v420
      %v425 = vpack.c.b16 %v424, %v423
      %426 = vrot.lane.b32.xlu0 %v242, 112
      %v427 = vpop.permute.xlu0 %426
      %428 = vrot.lane.b32.xlu0 %v243, 112
      %v429 = vpop.permute.xlu0 %428
      %vm430 = vcmask 916480
      %v431 = vsel %vm430, %v427, %v429
      %v435 = vsel %vm252, %v425, 0
      %437 = vmatprep.subr.bf16.mxu0 %v429
      %438 = vmatpush1.bf16.msra.mxu0 %v431
      %439 = vmatprep.subr.bf16.mxu0 0
      %440 = vmatpush1.bf16.msra.mxu0 0
      %441 = vmatprep.subr.bf16.mxu0 0
      %442 = vmatpush1.bf16.msra.mxu0 0
      %443 = vmatprep.subr.bf16.mxu0 0
      %444 = vmatpush1.bf16.msra.mxu0 0
      %445 = vmatprep.subr.bf16.mxu0 0
      %446 = vmatpush1.bf16.msra.mxu0 0
      %447 = vmatprep.subr.bf16.mxu0 0
      %448 = vmatpush1.bf16.msra.mxu0 0
      %449 = vmatprep.subr.bf16.mxu0 0
      %450 = vmatpush1.bf16.msra.mxu0 0
      %451 = vmatprep.subr.bf16.mxu0 0
      %452 = vmatpush1.bf16.msra.mxu0 0
      %453 = vmatprep.subr.bf16.mxu0 0
      %454 = vmatpush1.bf16.msra.mxu0 0
      %455 = vmatprep.subr.bf16.mxu0 0
      %456 = vmatpush1.bf16.msra.mxu0 0
      %457 = vmatprep.subr.bf16.mxu0 0
      %458 = vmatpush1.bf16.msra.mxu0 0
      %459 = vmatprep.subr.bf16.mxu0 0
      %460 = vmatpush1.bf16.msra.mxu0 0
      %461 = vmatprep.subr.bf16.mxu0 0
      %462 = vmatpush1.bf16.msra.mxu0 0
      %463 = vmatprep.subr.bf16.mxu0 0
      %464 = vmatpush1.bf16.msra.mxu0 0
      %465 = vmatprep.subr.bf16.mxu0 0
      %466 = vmatpush1.bf16.msra.mxu0 0
      %467 = vmatprep.subr.bf16.mxu0 0
      %468 = vmatpush1.bf16.msra.mxu0 0
      %469 = vmatprep.mubr.bf16.mxu0 0
      %470 = vmatmul.mubr.bf16.gmra.mrb[0].mxu0 %v435
      %v471 = vpop.f32.mrb[0].mxu0
      %v472 = vadd.f32 0.0, %v471
      %v473 = vpop.f32.mrb[0].mxu0
      %v474 = vadd.f32 0.0, %v473
      %v475 = vpop.f32.mrb[0].mxu0
      %v476 = vadd.f32 0.0, %v475
      %v477 = vpop.f32.mrb[0].mxu0
      %v478 = vadd.f32 0.0, %v477
      %479 = vdwg.mxu0
      %v480 = vadd.f32 %v414, %v472
      %v481 = vadd.f32 %v415, %v474
      %v482 = vadd.f32 %v416, %v476
      %v483 = vadd.f32 %v417, %v478
      %s484 = scalar_lea.vmem %s0, 32
      %v485 = vld [vmem:[%s484] sm:$0xf]
      %v486 = vld [vmem:[%s484 + $0x4] sm:$0xf]
      %v489 = vunpack.c.l.b16 %v485
      %v490 = vunpack.c.l.b16 %v486
      %v491 = vpack.c.b16 %v490, %v489
      %492 = vrot.lane.b32.xlu0 %v242, 111
      %v493 = vpop.permute.xlu0 %492
      %494 = vrot.lane.b32.xlu0 %v243, 111
      %v495 = vpop.permute.xlu0 %494
      %vm496 = vcmask 908288
      %v497 = vsel %vm496, %v493, %v495
      %v501 = vsel %vm252, %v491, 0
      %503 = vmatprep.subr.bf16.mxu0 %v495
      %504 = vmatpush1.bf16.msra.mxu0 %v497
      %505 = vmatprep.subr.bf16.mxu0 0
      %506 = vmatpush1.bf16.msra.mxu0 0
      %507 = vmatprep.subr.bf16.mxu0 0
      %508 = vmatpush1.bf16.msra.mxu0 0
      %509 = vmatprep.subr.bf16.mxu0 0
      %510 = vmatpush1.bf16.msra.mxu0 0
      %511 = vmatprep.subr.bf16.mxu0 0
      %512 = vmatpush1.bf16.msra.mxu0 0
      %513 = vmatprep.subr.bf16.mxu0 0
      %514 = vmatpush1.bf16.msra.mxu0 0
      %515 = vmatprep.subr.bf16.mxu0 0
      %516 = vmatpush1.bf16.msra.mxu0 0
      %517 = vmatprep.subr.bf16.mxu0 0
      %518 = vmatpush1.bf16.msra.mxu0 0
      %519 = vmatprep.subr.bf16.mxu0 0
      %520 = vmatpush1.bf16.msra.mxu0 0
      %521 = vmatprep.subr.bf16.mxu0 0
      %522 = vmatpush1.bf16.msra.mxu0 0
      %523 = vmatprep.subr.bf16.mxu0 0
      %524 = vmatpush1.bf16.msra.mxu0 0
      %525 = vmatprep.subr.bf16.mxu0 0
      %526 = vmatpush1.bf16.msra.mxu0 0
      %527 = vmatprep.subr.bf16.mxu0 0
      %528 = vmatpush1.bf16.msra.mxu0 0
      %529 = vmatprep.subr.bf16.mxu0 0
      %530 = vmatpush1.bf16.msra.mxu0 0
      %531 = vmatprep.subr.bf16.mxu0 0
      %532 = vmatpush1.bf16.msra.mxu0 0
      %533 = vmatprep.subr.bf16.mxu0 0
      %534 = vmatpush1.bf16.msra.mxu0 0
      %535 = vmatprep.mubr.bf16.mxu0 0
      %536 = vmatmul.mubr.bf16.gmra.mrb[0].mxu0 %v501
      %v537 = vpop.f32.mrb[0].mxu0
      %v538 = vadd.f32 0.0, %v537
      %v539 = vpop.f32.mrb[0].mxu0
      %v540 = vadd.f32 0.0, %v539
      %v541 = vpop.f32.mrb[0].mxu0
      %v542 = vadd.f32 0.0, %v541
      %v543 = vpop.f32.mrb[0].mxu0
      %v544 = vadd.f32 0.0, %v543
      %545 = vdwg.mxu0
      %v546 = vadd.f32 %v480, %v538
      %v547 = vadd.f32 %v481, %v540
      %v548 = vadd.f32 %v482, %v542
      %v549 = vadd.f32 %v483, %v544
      %s550 = scalar_lea.vmem %s0, 40
      %v551 = vld [vmem:[%s550] sm:$0xf]
      %v552 = vld [vmem:[%s550 + $0x4] sm:$0xf]
      %v555 = vunpack.c.l.b16 %v551
      %v556 = vunpack.c.l.b16 %v552
      %v557 = vpack.c.b16 %v556, %v555
      %558 = vrot.lane.b32.xlu0 %v242, 110
      %v559 = vpop.permute.xlu0 %558
      %560 = vrot.lane.b32.xlu0 %v243, 110
      %v561 = vpop.permute.xlu0 %560
      %vm562 = vcmask 900096
      %v563 = vsel %vm562, %v559, %v561
      %v567 = vsel %vm252, %v557, 0
      %569 = vmatprep.subr.bf16.mxu0 %v561
      %570 = vmatpush1.bf16.msra.mxu0 %v563
      %571 = vmatprep.subr.bf16.mxu0 0
      %572 = vmatpush1.bf16.msra.mxu0 0
      %573 = vmatprep.subr.bf16.mxu0 0
      %574 = vmatpush1.bf16.msra.mxu0 0
      %575 = vmatprep.subr.bf16.mxu0 0
      %576 = vmatpush1.bf16.msra.mxu0 0
      %577 = vmatprep.subr.bf16.mxu0 0
      %578 = vmatpush1.bf16.msra.mxu0 0
      %579 = vmatprep.subr.bf16.mxu0 0
      %580 = vmatpush1.bf16.msra.mxu0 0
      %581 = vmatprep.subr.bf16.mxu0 0
      %582 = vmatpush1.bf16.msra.mxu0 0
      %583 = vmatprep.subr.bf16.mxu0 0
      %584 = vmatpush1.bf16.msra.mxu0 0
      %585 = vmatprep.subr.bf16.mxu0 0
      %586 = vmatpush1.bf16.msra.mxu0 0
      %587 = vmatprep.subr.bf16.mxu0 0
      %588 = vmatpush1.bf16.msra.mxu0 0
      %589 = vmatprep.subr.bf16.mxu0 0
      %590 = vmatpush1.bf16.msra.mxu0 0
      %591 = vmatprep.subr.bf16.mxu0 0
      %592 = vmatpush1.bf16.msra.mxu0 0
      %593 = vmatprep.subr.bf16.mxu0 0
      %594 = vmatpush1.bf16.msra.mxu0 0
      %595 = vmatprep.subr.bf16.mxu0 0
      %596 = vmatpush1.bf16.msra.mxu0 0
      %597 = vmatprep.subr.bf16.mxu0 0
      %598 = vmatpush1.bf16.msra.mxu0 0
      %599 = vmatprep.subr.bf16.mxu0 0
      %600 = vmatpush1.bf16.msra.mxu0 0
      %601 = vmatprep.mubr.bf16.mxu0 0
      %602 = vmatmul.mubr.bf16.gmra.mrb[0].mxu0 %v567
      %v603 = vpop.f32.mrb[0].mxu0
      %v604 = vadd.f32 0.0, %v603
      %v605 = vpop.f32.mrb[0].mxu0
      %v606 = vadd.f32 0.0, %v605
      %v607 = vpop.f32.mrb[0].mxu0
      %v608 = vadd.f32 0.0, %v607
      %v609 = vpop.f32.mrb[0].mxu0
      %v610 = vadd.f32 0.0, %v609
      %611 = vdwg.mxu0
      %v612 = vadd.f32 %v546, %v604
      %v613 = vadd.f32 %v547, %v606
      %v614 = vadd.f32 %v548, %v608
      %v615 = vadd.f32 %v549, %v610
      %s616 = scalar_lea.vmem %s0, 48
      %v617 = vld [vmem:[%s616] sm:$0xf]
      %v618 = vld [vmem:[%s616 + $0x4] sm:$0xf]
      %v621 = vunpack.c.l.b16 %v617
      %v622 = vunpack.c.l.b16 %v618
      %v623 = vpack.c.b16 %v622, %v621
      %624 = vrot.lane.b32.xlu0 %v242, 96
      %v625 = vpop.permute.xlu0 %624
      %626 = vrot.lane.b32.xlu0 %v243, 96
      %v627 = vpop.permute.xlu0 %626
      %vm628 = vcmask 785408
      %v629 = vsel %vm628, %v625, %v627
      %v633 = vsel %vm252, %v623, 0
      %635 = vmatprep.subr.bf16.mxu0 %v627
      %636 = vmatpush1.bf16.msra.mxu0 %v629
      %637 = vmatprep.subr.bf16.mxu0 0
      %638 = vmatpush1.bf16.msra.mxu0 0
      %639 = vmatprep.subr.bf16.mxu0 0
      %640 = vmatpush1.bf16.msra.mxu0 0
      %641 = vmatprep.subr.bf16.mxu0 0
      %642 = vmatpush1.bf16.msra.mxu0 0
      %643 = vmatprep.subr.bf16.mxu0 0
      %644 = vmatpush1.bf16.msra.mxu0 0
      %645 = vmatprep.subr.bf16.mxu0 0
      %646 = vmatpush1.bf16.msra.mxu0 0
      %647 = vmatprep.subr.bf16.mxu0 0
      %648 = vmatpush1.bf16.msra.mxu0 0
      %649 = vmatprep.subr.bf16.mxu0 0
      %650 = vmatpush1.bf16.msra.mxu0 0
      %651 = vmatprep.subr.bf16.mxu0 0
      %652 = vmatpush1.bf16.msra.mxu0 0
      %653 = vmatprep.subr.bf16.mxu0 0
      %654 = vmatpush1.bf16.msra.mxu0 0
      %655 = vmatprep.subr.bf16.mxu0 0
      %656 = vmatpush1.bf16.msra.mxu0 0
      %657 = vmatprep.subr.bf16.mxu0 0
      %658 = vmatpush1.bf16.msra.mxu0 0
      %659 = vmatprep.subr.bf16.mxu0 0
      %660 = vmatpush1.bf16.msra.mxu0 0
      %661 = vmatprep.subr.bf16.mxu0 0
      %662 = vmatpush1.bf16.msra.mxu0 0
      %663 = vmatprep.subr.bf16.mxu0 0
      %664 = vmatpush1.bf16.msra.mxu0 0
      %665 = vmatprep.subr.bf16.mxu0 0
      %666 = vmatpush1.bf16.msra.mxu0 0
      %667 = vmatprep.mubr.bf16.mxu0 0
      %668 = vmatmul.mubr.bf16.gmra.mrb[0].mxu0 %v633
      %v669 = vpop.f32.mrb[0].mxu0
      %v670 = vadd.f32 0.0, %v669
      %v671 = vpop.f32.mrb[0].mxu0
      %v672 = vadd.f32 0.0, %v671
      %v673 = vpop.f32.mrb[0].mxu0
      %v674 = vadd.f32 0.0, %v673
      %v675 = vpop.f32.mrb[0].mxu0
      %v676 = vadd.f32 0.0, %v675
      %677 = vdwg.mxu0
      %v678 = vadd.f32 %v612, %v670
      %v679 = vadd.f32 %v613, %v672
      %v680 = vadd.f32 %v614, %v674
      %v681 = vadd.f32 %v615, %v676
      %v682 = vld [vmem:[%s207] sm:$0xff]
      %v683 = vld [vmem:[%s207 + $0x8] sm:$0xf]
      %v684 = vld [vmem:[%s207 + $0xc] sm:$0xff]
      %v685 = vld [vmem:[%s207 + $0x14] sm:$0xf]
      %s686 = scalar_lea.vmem %s0, 56
      %v687 = vld [vmem:[%s686] sm:$0xf]
      %v688 = vld [vmem:[%s686 + $0x4] sm:$0xf]
      %v691 = vunpack.c.l.b16 %v687
      %v692 = vunpack.c.l.b16 %v688
      %v693 = vpack.c.b16 %v692, %v691
      %v698 = vunpack.c.l.b16 %v682
      %v699 = vunpack.c.h.b16 %v682
      %v700 = vunpack.c.l.b16 %v683
      %v701 = vunpack.c.l.b16 %v684
      %v702 = vunpack.c.h.b16 %v684
      %v703 = vunpack.c.l.b16 %v685
      %v704 = vpack.c.b16 %v701, %v698
      %v705 = vpack.c.b16 %v702, %v699
      %v706 = vpack.c.b16 %v703, %v700
      %707 = vrot.lane.b32.xlu0 %v704, 95
      %v708 = vpop.permute.xlu0 %707
      %709 = vrot.lane.b32.xlu0 %v705, 95
      %v710 = vpop.permute.xlu0 %709
      %711 = vrot.lane.b32.xlu0 %v706, 95
      %v712 = vpop.permute.xlu0 %711
      %vm713 = vcmask 777216
      %v714 = vsel %vm713, %v708, %v710
      %v715 = vsel %vm713, %v710, %v712
      %v719 = vsel %vm252, %v693, 0
      %721 = vmatprep.subr.bf16.mxu0 %v715
      %722 = vmatpush1.bf16.msra.mxu0 %v714
      %723 = vmatprep.subr.bf16.mxu0 0
      %724 = vmatpush1.bf16.msra.mxu0 0
      %725 = vmatprep.subr.bf16.mxu0 0
      %726 = vmatpush1.bf16.msra.mxu0 0
      %727 = vmatprep.subr.bf16.mxu0 0
      %728 = vmatpush1.bf16.msra.mxu0 0
      %729 = vmatprep.subr.bf16.mxu0 0
      %730 = vmatpush1.bf16.msra.mxu0 0
      %731 = vmatprep.subr.bf16.mxu0 0
      %732 = vmatpush1.bf16.msra.mxu0 0
      %733 = vmatprep.subr.bf16.mxu0 0
      %734 = vmatpush1.bf16.msra.mxu0 0
      %735 = vmatprep.subr.bf16.mxu0 0
      %736 = vmatpush1.bf16.msra.mxu0 0
      %737 = vmatprep.subr.bf16.mxu0 0
      %738 = vmatpush1.bf16.msra.mxu0 0
      %739 = vmatprep.subr.bf16.mxu0 0
      %740 = vmatpush1.bf16.msra.mxu0 0
      %741 = vmatprep.subr.bf16.mxu0 0
      %742 = vmatpush1.bf16.msra.mxu0 0
      %743 = vmatprep.subr.bf16.mxu0 0
      %744 = vmatpush1.bf16.msra.mxu0 0
      %745 = vmatprep.subr.bf16.mxu0 0
      %746 = vmatpush1.bf16.msra.mxu0 0
      %747 = vmatprep.subr.bf16.mxu0 0
      %748 = vmatpush1.bf16.msra.mxu0 0
      %749 = vmatprep.subr.bf16.mxu0 0
      %750 = vmatpush1.bf16.msra.mxu0 0
      %751 = vmatprep.subr.bf16.mxu0 0
      %752 = vmatpush1.bf16.msra.mxu0 0
      %753 = vmatprep.mubr.bf16.mxu0 0
      %754 = vmatmul.mubr.bf16.gmra.mrb[0].mxu0 %v719
      %v755 = vpop.f32.mrb[0].mxu0
      %v756 = vadd.f32 0.0, %v755
      %v757 = vpop.f32.mrb[0].mxu0
      %v758 = vadd.f32 0.0, %v757
      %v759 = vpop.f32.mrb[0].mxu0
      %v760 = vadd.f32 0.0, %v759
      %v761 = vpop.f32.mrb[0].mxu0
      %v762 = vadd.f32 0.0, %v761
      %763 = vdwg.mxu0
      %v764 = vadd.f32 %v678, %v756
      %v765 = vadd.f32 %v679, %v758
      %v766 = vadd.f32 %v680, %v760
      %v767 = vadd.f32 %v681, %v762
      %s768 = scalar_lea.vmem %s0, 64
      %v769 = vld [vmem:[%s768] sm:$0xf]
      %v770 = vld [vmem:[%s768 + $0x4] sm:$0xf]
      %v773 = vunpack.c.l.b16 %v769
      %v774 = vunpack.c.l.b16 %v770
      %v775 = vpack.c.b16 %v774, %v773
      %776 = vrot.lane.b32.xlu0 %v704, 94
      %v777 = vpop.permute.xlu0 %776
      %778 = vrot.lane.b32.xlu0 %v705, 94
      %v779 = vpop.permute.xlu0 %778
      %780 = vrot.lane.b32.xlu0 %v706, 94
      %v781 = vpop.permute.xlu0 %780
      %vm782 = vcmask 769024
      %v783 = vsel %vm782, %v777, %v779
      %v784 = vsel %vm782, %v779, %v781
      %v788 = vsel %vm252, %v775, 0
      %790 = vmatprep.subr.bf16.mxu0 %v784
      %791 = vmatpush1.bf16.msra.mxu0 %v783
      %792 = vmatprep.subr.bf16.mxu0 0
      %793 = vmatpush1.bf16.msra.mxu0 0
      %794 = vmatprep.subr.bf16.mxu0 0
      %795 = vmatpush1.bf16.msra.mxu0 0
      %796 = vmatprep.subr.bf16.mxu0 0
      %797 = vmatpush1.bf16.msra.mxu0 0
      %798 = vmatprep.subr.bf16.mxu0 0
      %799 = vmatpush1.bf16.msra.mxu0 0
      %800 = vmatprep.subr.bf16.mxu0 0
      %801 = vmatpush1.bf16.msra.mxu0 0
      %802 = vmatprep.subr.bf16.mxu0 0
      %803 = vmatpush1.bf16.msra.mxu0 0
      %804 = vmatprep.subr.bf16.mxu0 0
      %805 = vmatpush1.bf16.msra.mxu0 0
      %806 = vmatprep.subr.bf16.mxu0 0
      %807 = vmatpush1.bf16.msra.mxu0 0
      %808 = vmatprep.subr.bf16.mxu0 0
      %809 = vmatpush1.bf16.msra.mxu0 0
      %810 = vmatprep.subr.bf16.mxu0 0
      %811 = vmatpush1.bf16.msra.mxu0 0
      %812 = vmatprep.subr.bf16.mxu0 0
      %813 = vmatpush1.bf16.msra.mxu0 0
      %814 = vmatprep.subr.bf16.mxu0 0
      %815 = vmatpush1.bf16.msra.mxu0 0
      %816 = vmatprep.subr.bf16.mxu0 0
      %817 = vmatpush1.bf16.msra.mxu0 0
      %818 = vmatprep.subr.bf16.mxu0 0
      %819 = vmatpush1.bf16.msra.mxu0 0
      %820 = vmatprep.subr.bf16.mxu0 0
      %821 = vmatpush1.bf16.msra.mxu0 0
      %822 = vmatprep.mubr.bf16.mxu0 0
      %823 = vmatmul.mubr.bf16.gmra.mrb[0].mxu0 %v788
      %v824 = vpop.f32.mrb[0].mxu0
      %v825 = vadd.f32 0.0, %v824
      %v826 = vpop.f32.mrb[0].mxu0
      %v827 = vadd.f32 0.0, %v826
      %v828 = vpop.f32.mrb[0].mxu0
      %v829 = vadd.f32 0.0, %v828
      %v830 = vpop.f32.mrb[0].mxu0
      %v831 = vadd.f32 0.0, %v830
      %832 = vdwg.mxu0
      %v833 = vadd.f32 %v764, %v825
      %v834 = vadd.f32 %v765, %v827
      %v835 = vadd.f32 %v766, %v829
      %v836 = vadd.f32 %v767, %v831
      %v837 = vpack.c.bf16 %v835, %v833
      %v838 = vpack.c.bf16 %v836, %v834
      %v841 = vunpack.c.l.b16 %v837
      %v842 = vunpack.c.l.b16 %v838
      %v843 = vunpack.c.h.b16 %v837
      %v844 = vunpack.c.h.b16 %v838
      %v845 = vpack.c.b16 %v842, %v841
      %v846 = vpack.c.b16 %v844, %v843
      %vm849 = vcmask 1043456
      %vm850 = vcmask 785412
      %vm851 = vmor %vm850, %vm849
      %852 = vst.msk [vmem:[%s212] sm:$0xff] %vm851, %v845
      %853 = vst.msk [vmem:[%s212 + $0x8] sm:$0xff] %vm851, %v846
      %v854 = vlaneseq
      %v855 = vand.u32 %v854, 127
      %v856 = vadd.s32 %v855, 128
      %vm857 = vcmp.lt.s32.totalorder %v855, 0
      %v858 = vsub.s32 0, %v855
      %v859 = vsel %vm857, %v858, %v855
      %v860 = vshrl.u32 %v859, 4
      %v861 = vand.u32 %v859, 15
      %v862 = vsub.s32 0, %v861
      %v863 = vsel %vm857, %v862, %v861
      %vm864 = vcmp.lt.s32.totalorder %v856, 0
      %v865 = vsub.s32 0, %v856
      %v866 = vsel %vm864, %v865, %v856
      %v867 = vshrl.u32 %v866, 4
      %v868 = vand.u32 %v866, 15
      %v869 = vsub.s32 0, %v868
      %v870 = vsel %vm864, %v869, %v868
      %vm871 = vcmp.ne.s32.totalorder %v863, 0
      %vm872 = vcmp.ne.s32.totalorder %v870, 0
      %vm873 = vcmp.lt.s32.totalorder %v863, 0
      %vm874 = vcmp.lt.s32.totalorder %v870, 0
      %vm875 = vmand %vm873, %vm871
      %vm876 = vmand %vm874, %vm872
      %v877 = vadd.s32 %v863, 16
      %v878 = vadd.s32 %v870, 16
      %v879 = vsel %vm875, %v877, %v863
      %v880 = vsel %vm876, %v878, %v870
      %vm881 = vcmp.lt.s32.totalorder %v879, 14
      %vm882 = vcmp.lt.s32.totalorder %v880, 14
      %v883 = vsel %vm881, 1, 0
      %v884 = vsel %vm882, 1, 0
      %vm885 = vcmp.eq.s32.totalorder %v883, 1
      %vm886 = vcmp.eq.s32.totalorder %v884, 1
      %v887 = vsel %vm885, %v833, 0.0
      %v888 = vsel %vm886, %v834, 0.0
      %v889 = vsel %vm885, %v835, 0.0
      %v890 = vsel %vm886, %v836, 0.0
      %vm891 = vcmask 785408
      %v892 = vsel %vm891, %v888, 0.0
      %v893 = vadd.f32 %v887, %v892
      %894 = vadd.xlane.f32.xlu0 %v893
      %v895 = vpop.xlane.xlu0 %894
      %v896 = vsel %vm891, %v890, 0.0
      %v897 = vadd.f32 %v889, %v896
      %898 = vadd.xlane.f32.xlu0 %v897
      %v899 = vpop.xlane.xlu0 %898
      %vm900 = vcmask 7168
      %901 = vst.msk [vmem:[%s217] sm:$0xff] %vm900, %v895
      %902 = vst.msk [vmem:[%s217 + $0x8] sm:$0xff] %vm900, %v899
      %v903 = vmul.f32 %v887, %v887
      %v904 = vmul.f32 %v888, %v888
      %v905 = vmul.f32 %v889, %v889
      %v906 = vmul.f32 %v890, %v890
      %v907 = vsel %vm891, %v904, 0.0
      %v908 = vadd.f32 %v903, %v907
      %909 = vadd.xlane.f32.xlu0 %v908
      %v910 = vpop.xlane.xlu0 %909
      %v911 = vsel %vm891, %v906, 0.0
      %v912 = vadd.f32 %v905, %v911
      %913 = vadd.xlane.f32.xlu0 %v912
      %v914 = vpop.xlane.xlu0 %913
      %915 = vst.msk [vmem:[%s222] sm:$0xff] %vm900, %v910
      %916 = vst.msk [vmem:[%s222 + $0x8] sm:$0xff] %vm900, %v914
      %p917 = scmp.lt.s32.totalorder %s16, 1
      %s918 = scalar_select %p917, %s16, 1
      %s919 = smul.addr %s918, 4
      %s920 = smul.addr %s919, 4
      %s921 = scalar_lea.vmem %s2, %s920
      %p922 = scmp.lt.s32.totalorder %s16, 1
      %s923 = scalar_select %p922, %s16, 1
      %s924 = smul.addr %s923, 2
      %s925 = smul.addr %s924, 8
      %s926 = scalar_lea.vmem %s3, %s925
      %p927 = scmp.lt.s32.totalorder %s16, 1
      %s928 = scalar_select %p927, %s16, 1
      %s929 = smul.addr %s928, 2
      %s930 = smul.addr %s929, 8
      %s931 = scalar_lea.vmem %s4, %s930
      // Predicated region
      $region29: #{conv_bn_relu.1} parent=27 // pred_check
        %p932 = pneg %p81
      $region30: #{conv_bn_relu.1} parent=27 // pred_check_branch
        %934 = sbr.rel (%p932) target = $region32
      $region31: #{conv_bn_relu.1} parent=27 // pred_region
        _
      $region32: #{conv_bn_relu.1} parent=27 // pred_fallthru
        _
      // Predicated region
      $region33: #{conv_bn_relu.1} parent=27 // pred_check
        %p935 = pneg %p107
      $region34: #{conv_bn_relu.1} parent=27 // pred_check_branch
        %937 = sbr.rel (%p935) target = $region36
      $region35: #{conv_bn_relu.1} parent=27 // pred_region
        _
      $region36: #{conv_bn_relu.1} parent=27 // pred_fallthru
        _
      // Predicated region
      $region37: #{conv_bn_relu.1} parent=27 // pred_check
        %p938 = pneg %p133
      $region38: #{conv_bn_relu.1} parent=27 // pred_check_branch
        %940 = sbr.rel (%p938) target = $region40
      $region39: #{conv_bn_relu.1} parent=27 // pred_region
        _
      $region40: #{conv_bn_relu.1} parent=27 // pred_fallthru
        _
    $region28: #{conv_bn_relu.1} parent=5 // pred_fallthru
      _
    %p941 = scmp.le.s32.totalorder 2, %s11
    // Predicated region
    $region41: #{conv_bn_relu.1} parent=5 // pred_check
      %p942 = pneg %p941
    $region42: #{conv_bn_relu.1} parent=5 // pred_check_branch
      %944 = sbr.rel (%p942) target = $region44
    $region43: #{conv_bn_relu.1} parent=5 // pred_region
      %s945 = ssub.s32 %s11, 2
      // Predicated region
      $region45: #{conv_bn_relu.1} parent=43 // pred_check
        %p946 = pneg %p87
      $region46: #{conv_bn_relu.1} parent=43 // pred_check_branch
        %948 = sbr.rel (%p946) target = $region48
      $region47: #{conv_bn_relu.1} parent=43 // pred_region
        %p949 = scmp.lt.s32.totalorder %s17, 1
        %s950 = scalar_select %p949, %s17, 1
        %s951 = smul.addr %s950, 4
        %s952 = smul.addr %s951, 4
        %s953 = scalar_lea.vmem %s2, %s952
      $region48: #{conv_bn_relu.1} parent=43 // pred_fallthru
        _
      // Predicated region
      $region49: #{conv_bn_relu.1} parent=43 // pred_check
        %p954 = pneg %p113
      $region50: #{conv_bn_relu.1} parent=43 // pred_check_branch
        %956 = sbr.rel (%p954) target = $region52
      $region51: #{conv_bn_relu.1} parent=43 // pred_region
        %p957 = scmp.lt.s32.totalorder %s17, 1
        %s958 = scalar_select %p957, %s17, 1
        %s959 = smul.addr %s958, 2
        %s960 = smul.addr %s959, 8
        %s961 = scalar_lea.vmem %s3, %s960
      $region52: #{conv_bn_relu.1} parent=43 // pred_fallthru
        _
      // Predicated region
      $region53: #{conv_bn_relu.1} parent=43 // pred_check
        %p962 = pneg %p139
      $region54: #{conv_bn_relu.1} parent=43 // pred_check_branch
        %964 = sbr.rel (%p962) target = $region56
      $region55: #{conv_bn_relu.1} parent=43 // pred_region
        %p965 = scmp.lt.s32.totalorder %s17, 1
        %s966 = scalar_select %p965, %s17, 1
        %s967 = smul.addr %s966, 2
        %s968 = smul.addr %s967, 8
        %s969 = scalar_lea.vmem %s4, %s968
      $region56: #{conv_bn_relu.1} parent=43 // pred_fallthru
        _
    $region44: #{conv_bn_relu.1} parent=5 // pred_fallthru
      _
  $region6: #{conv_bn_relu.1} parent=0 // loop_footer
    %s15 = sadd.s32 1, %s11
  $region7: #{conv_bn_relu.1} parent=0 // loop_footer_branch
    %10 = sbr.rel target = $region3
  $region8: #{conv_bn_relu.1} parent=0 // loop_exit
    _

</llo_original>
